<compile_context>
chip_gen: v5e
topology: v5e:2x2
jax: 0.10.0
libtpu: 0.0.40
codegen_flags: <defaults>
</compile_context>

<pallas_src>
import functools

import jax
import jax.numpy as jnp
from jax import lax
from jax.experimental import pallas as pl
from jax.experimental.pallas import tpu as pltpu

HIDDEN = 128  # hidden width of the coupling nets (from _build_net)


def _round_up(x, m):
    return ((x + m - 1) // m) * m


def _padded_vmem_bytes(shape, dtype):
    """Rough per-block VMEM footprint including (sublane, lane) padding."""
    itemsize = jnp.dtype(dtype).itemsize
    dims = list(shape)
    if len(dims) >= 1:
        dims[-1] = _round_up(dims[-1], 128)
    if len(dims) >= 2:
        dims[-2] = _round_up(dims[-2], 8 * (4 // itemsize))
    n = 1
    for d in dims:
        n *= d
    return n * itemsize


def _cinn_forward_kernel(split, num_layers, unroll,
                         h_ref, z2_ref,
                         w1_ref, b1_ref, w2_ref, b2_ref,
                         z2_out_ref, ldj_ref):
    """Whole CINN.forward for one batch tile: loops over all coupling layers.

    h_ref  : (TB, split + C)  f32   (= concat(z1, y), layer-invariant)
    z2_ref : (TB, split)      f32
    w1_ref : (L, split + C, 2H) bf16   fused [scale | translate] first Linear
    b1_ref : (L, 1, 2H)         f32
    w2_ref : (L, 2H, 2*split)   bf16   block-diagonal second Linear
    b2_ref : (L, 1, 2*split)    f32
    z2_out_ref : (TB, split)    f32
    ldj_ref    : (8, TB)        f32   lane-dense (batch along lanes), row 0 used
    """
    h = h_ref[...].astype(jnp.bfloat16)               # (TB, split + C)
    tb = z2_ref.shape[0]

    def body(l, carry):
        z2, ldj_acc = carry
        # fused first Linear of scale_net & translate_net: N = 2*HIDDEN
        hid = jnp.maximum(
            jnp.dot(h, w1_ref[l], preferred_element_type=jnp.float32)
            + b1_ref[l], 0.0)                          # (TB, 2*HIDDEN) f32
        # fused (block-diagonal) second Linear: [scale | translate]
        st = jnp.dot(hid.astype(jnp.bfloat16), w2_ref[l],
                     preferred_element_type=jnp.float32) + b2_ref[l]
        scale = jnp.clip(st[:, :split], -5.0, 5.0)     # torch.clamp(-5, 5)
        translate = st[:, split:]
        z2 = z2 * jnp.exp(scale) + translate
        ldj_acc = ldj_acc + scale                      # VPU accumulate, reduce later
        return z2, ldj_acc

    z2, ldj_acc = lax.fori_loop(
        0, num_layers, body,
        (z2_ref[...], jnp.zeros((tb, split), jnp.float32)),
        unroll=unroll)

    z2_out_ref[...] = z2
    # one cross-lane reduction per tile, emitted lane-dense (batch along lanes)
    ldj_row = jnp.sum(ldj_acc.T, axis=0, keepdims=True)        # (1, TB)
    ldj_ref[...] = jnp.broadcast_to(ldj_row, ldj_ref.shape)    # (8, TB)


def pack_cinn_params(params):
    """Pack raw per-net weights into fused stacks for the kernel.

    W1: [L, split+C, 2H]   bf16  (scale | translate along output)
    B1: [L, 1, 2H]         f32
    W2: [L, 2H, 2*split]   bf16  block-diagonal: [[w2s, 0], [0, w2t]]
    B2: [L, 1, 2*split]    f32
    """
    w1s, b1s, w2s, b2s, w1t, b1t, w2t, b2t = params
    L, _, H = w1s.shape
    split = w2s.shape[2]
    W1 = jnp.concatenate([w1s, w1t], axis=2).astype(jnp.bfloat16)
    B1 = jnp.concatenate([b1s, b1t], axis=1)[:, None, :].astype(jnp.float32)
    zeros = jnp.zeros((L, H, split), jnp.float32)
    W2 = jnp.concatenate(
        [jnp.concatenate([w2s, zeros], axis=2),
         jnp.concatenate([zeros, w2t], axis=2)], axis=1).astype(jnp.bfloat16)
    B2 = jnp.concatenate([b2s, b2t], axis=1)[:, None, :].astype(jnp.float32)
    return W1, B1, W2, B2


def cinn_forward(z, y, params):
    """CINN.forward(z, y) -> (z_out, log_det_jacobian). (output_layer unused in forward.)"""
    W1, B1, W2, B2 = pack_cinn_params(params)
    B, D = z.shape
    C = y.shape[1]
    assert D % 2 == 0, "CINN coupling layers require an even input_dim"
    split = D // 2
    L, in1, H2 = W1.shape           # in1 = split + C, H2 = 2*HIDDEN

    # Build layer-invariant h = concat(z1, y) and the z2 slice outside the
    # kernel; assemble z_out outside too (kernel only touches z2).
    z1 = z[:, :split]
    h = jnp.concatenate([z1, y], axis=-1).astype(jnp.float32)   # (B, in1)
    z2_in = z[:, split:].astype(jnp.float32)                    # (B, split)

    # Batch tile: big tiles amortize per-layer MXU weight pushes and the
    # ~0.35us per-grid-step overhead; for mid-size batches use >=2 tiles so
    # both v7x TensorCores get work (tiles kept lane/sublane friendly).
    if B <= 128:
        TB = _round_up(B, 8)                       # single tile == full extent
    else:
        TB = min(512, _round_up((B + 1) // 2, 128))  # >=2 tiles, 128-aligned
    B_pad = _round_up(B, TB)
    if B_pad != B:
        pad = ((0, B_pad - B), (0, 0))
        h = jnp.pad(h, pad)
        z2_in = jnp.pad(z2_in, pad)
    num_tiles = B_pad // TB

    unroll = max(1, min(L, 4))
    kernel = functools.partial(_cinn_forward_kernel, split, L, unroll)

    # Advisory cost estimate for the XLA scheduler.
    flops = 2 * B_pad * L * (in1 * H2 + H2 * 2 * split)
    bytes_accessed = (h.size * 4 + z2_in.size * 4
                      + W1.size * 2 + W2.size * 2 + B1.size * 4 + B2.size * 4
                      + B_pad * split * 4 + 8 * B_pad * 4)
    cost = pl.CostEstimate(flops=flops,
                           transcendentals=B_pad * L * split,
                           bytes_accessed=bytes_accessed)

    # Explicit VMEM budget: 2x (double-buffer) padded block footprints + slack,
    # clamped to 64 MiB so it is valid on v7x (64 MiB physical) as well.
    block_bytes = (
        _padded_vmem_bytes((TB, in1), jnp.float32)
        + _padded_vmem_bytes((TB, split), jnp.float32)
        + _padded_vmem_bytes((L, in1, H2), jnp.bfloat16)
        + _padded_vmem_bytes((L, 1, H2), jnp.float32)
        + _padded_vmem_bytes((L, H2, 2 * split), jnp.bfloat16)
        + _padded_vmem_bytes((L, 1, 2 * split), jnp.float32)
        + _padded_vmem_bytes((TB, split), jnp.float32)
        + _padded_vmem_bytes((8, TB), jnp.float32))
    vmem_limit = int(min(max(4 * block_bytes, 16 << 20), 64 << 20))

    z2_out, ldj_out = pl.pallas_call(
        kernel,
        out_shape=(jax.ShapeDtypeStruct((B_pad, split), jnp.float32),
                   jax.ShapeDtypeStruct((8, B_pad), jnp.float32)),
        grid_spec=pltpu.PrefetchScalarGridSpec(
            num_scalar_prefetch=0,
            grid=(num_tiles,),
            in_specs=[
                pl.BlockSpec((TB, in1), lambda b: (b, 0)),           # h tile
                pl.BlockSpec((TB, split), lambda b: (b, 0)),         # z2 tile
                pl.BlockSpec((L, in1, H2), lambda b: (0, 0, 0)),     # W1 stack (resident)
                pl.BlockSpec((L, 1, H2), lambda b: (0, 0, 0)),       # b1 stack
                pl.BlockSpec((L, H2, 2 * split), lambda b: (0, 0, 0)),  # W2 stack
                pl.BlockSpec((L, 1, 2 * split), lambda b: (0, 0, 0)),   # b2 stack
            ],
            out_specs=(pl.BlockSpec((TB, split), lambda b: (b, 0)),  # z2 out
                       pl.BlockSpec((8, TB), lambda b: (0, b))),     # ldj (lane-dense)
        ),
        compiler_params=pltpu.CompilerParams(
            dimension_semantics=("parallel",),
            vmem_limit_bytes=vmem_limit),
        cost_estimate=cost,
    )(h, z2_in, W1, B1, W2, B2)

    z_out = jnp.concatenate([z1, z2_out[:B]], axis=-1)
    ldj = ldj_out[0, :B]
    return z_out, ldj


# --------------------------- parameter construction ---------------------------

def _xavier_uniform(key, fan_in, fan_out):
    bound = (6.0 / (fan_in + fan_out)) ** 0.5
    return jax.random.uniform(key, (fan_in, fan_out), jnp.float32, -bound, bound)


def _bias(key, fan_in, size):
    bound = 1.0 / (fan_in ** 0.5)
    return jax.random.uniform(key, (size,), jnp.float32, -bound, bound)


def init_cinn_params(key, input_dim, condition_dim, num_layers):
    split = input_dim // 2
    in1 = split + condition_dim
    w1s, b1s, w2s, b2s = [], [], [], []
    w1t, b1t, w2t, b2t = [], [], [], []
    for l in range(num_layers):
        ks = jax.random.split(jax.random.fold_in(key, l), 8)
        w1s.append(_xavier_uniform(ks[0], in1, HIDDEN))
        b1s.append(_bias(ks[1], in1, HIDDEN))
        w2s.append(_xavier_uniform(ks[2], HIDDEN, split))
        b2s.append(_bias(ks[3], HIDDEN, split))
        w1t.append(_xavier_uniform(ks[4], in1, HIDDEN))
        b1t.append(_bias(ks[5], in1, HIDDEN))
        w2t.append(_xavier_uniform(ks[6], HIDDEN, split))
        b2t.append(_bias(ks[7], HIDDEN, split))
    stack = lambda xs: jnp.stack(xs, axis=0)
    return (stack(w1s), stack(b1s), stack(w2s), stack(b2s),
            stack(w1t), stack(b1t), stack(w2t), stack(b2t))
    # NOTE: CINN also owns an output_layer Linear(input_dim, output_dim), but it
    # is only used in inverse(), not in forward(), so it is not needed here.
    # TODO(synk): inverse() path (with output_layer) not implemented.


# --------------------------------- reference ----------------------------------

def cinn_forward_ref(z, y, params):
    w1s, b1s, w2s, b2s, w1t, b1t, w2t, b2t = params
    L = w1s.shape[0]
    split = z.shape[1] // 2
    ldj = jnp.zeros((z.shape[0],), jnp.float32)
    for l in range(L):
        z1, z2 = z[:, :split], z[:, split:]
        h = jnp.concatenate([z1, y], axis=-1)
        hs = jnp.maximum(h @ w1s[l] + b1s[l], 0.0)
        scale = jnp.clip(hs @ w2s[l] + b2s[l], -5.0, 5.0)
        ht = jnp.maximum(h @ w1t[l] + b1t[l], 0.0)
        tr = ht @ w2t[l] + b2t[l]
        z2 = z2 * jnp.exp(scale) + tr
        z = jnp.concatenate([z1, z2], axis=-1)
        ldj = ldj + scale.sum(-1)
    return z, ldj


# ----------------------------------- main --------------------------------------

if __name__ == "__main__":
    B = 8             # batch
    INPUT_DIM = 16    # z dim (split = 8)
    COND_DIM = 8      # y dim
    NUM_LAYERS = 3

    key = jax.random.PRNGKey(0)
    kz, ky, kp = jax.random.split(key, 3)
    z = jax.random.normal(kz, (B, INPUT_DIM), jnp.float32)
    y = jax.random.normal(ky, (B, COND_DIM), jnp.float32)
    params = init_cinn_params(kp, INPUT_DIM, COND_DIM, NUM_LAYERS)

    z_out, ldj = cinn_forward(z, y, params)
    jax.block_until_ready((z_out, ldj))

    # bf16 matmul operands (f32 accumulation) -> loosened tolerances vs f32 ref.
    z_ref, ldj_ref = cinn_forward_ref(z, y, params)
    assert jnp.allclose(z_out, z_ref, rtol=5e-2, atol=2e-1), "z mismatch"
    assert jnp.allclose(ldj, ldj_ref, rtol=5e-2, atol=2e-1), "log_det_jacobian mismatch"

    print("KERNEL_OK")
</pallas_src>

<mosaic_0001>
module attributes {stable_mosaic.version = 11 : i64} {
  func.func @_cinn_forward_kernel(%arg0: i32, %arg1: memref<8x16xf32, #tpu.memory_space<vmem>>, %arg2: memref<8x8xf32, #tpu.memory_space<vmem>>, %arg3: memref<3x16x256xbf16, #tpu.memory_space<vmem>>, %arg4: memref<3x1x256xf32, #tpu.memory_space<vmem>>, %arg5: memref<3x256x16xbf16, #tpu.memory_space<vmem>>, %arg6: memref<3x1x16xf32, #tpu.memory_space<vmem>>, %arg7: memref<8x8xf32, #tpu.memory_space<vmem>>, %arg8: memref<8x8xf32, #tpu.memory_space<vmem>>) attributes {dimension_semantics = [#tpu.dimension_semantics<parallel>], iteration_bounds = array<i64: 1>, scalar_prefetch = 0 : i64, scratch_operands = 0 : i64, tpu.core_type = #tpu.core_type<tc>, window_params = [{transform_indices = @transform_0, window_bounds = array<i64: 8, 16>}, {transform_indices = @transform_1, window_bounds = array<i64: 8, 8>}, {pipeline_mode = #tpu.pipeline_mode<synchronous>, transform_indices = @transform_2, window_bounds = array<i64: 3, 16, 256>}, {pipeline_mode = #tpu.pipeline_mode<synchronous>, transform_indices = @transform_3, window_bounds = array<i64: 3, 1, 256>}, {pipeline_mode = #tpu.pipeline_mode<synchronous>, transform_indices = @transform_4, window_bounds = array<i64: 3, 256, 16>}, {pipeline_mode = #tpu.pipeline_mode<synchronous>, transform_indices = @transform_5, window_bounds = array<i64: 3, 1, 16>}, {transform_indices = @transform_6, window_bounds = array<i64: 8, 8>}, {transform_indices = @transform_7, window_bounds = array<i64: 8, 8>}]} {
    %c0 = arith.constant 0 : index
    %c0_0 = arith.constant 0 : index
    %0 = vector.load %arg1[%c0, %c0_0] : memref<8x16xf32, #tpu.memory_space<vmem>>, vector<8x16xf32>
    %1 = arith.truncf %0 : vector<8x16xf32> to vector<8x16xbf16>
    %c0_1 = arith.constant 0 : index
    %c0_2 = arith.constant 0 : index
    %2 = vector.load %arg2[%c0_1, %c0_2] : memref<8x8xf32, #tpu.memory_space<vmem>>, vector<8x8xf32>
    %cst = arith.constant 0.000000e+00 : f32
    %3 = vector.broadcast %cst : f32 to vector<8x8xf32>
    %c0_i32 = arith.constant 0 : i32
    %4 = arith.index_cast %c0_i32 : i32 to index
    %c0_3 = arith.constant 0 : index
    %c0_4 = arith.constant 0 : index
    %5 = vector.load %arg3[%4, %c0_3, %c0_4] : memref<3x16x256xbf16, #tpu.memory_space<vmem>>, vector<1x16x256xbf16>
    %6 = vector.shape_cast %5 : vector<1x16x256xbf16> to vector<16x256xbf16>
    %cst_5 = arith.constant dense<0.000000e+00> : vector<8x256xf32>
    %7 = tpu.matmul %1, %6, %cst_5 {dimension_numbers = #tpu.dot_dimension_numbers<[1], [0], [0], [1], [0, 0, 1, 1], [], []>} : vector<8x16xbf16>, vector<16x256xbf16>, vector<8x256xf32> -> vector<8x256xf32>
    %8 = arith.index_cast %c0_i32 : i32 to index
    %c0_6 = arith.constant 0 : index
    %c0_7 = arith.constant 0 : index
    %9 = vector.load %arg4[%8, %c0_6, %c0_7] : memref<3x1x256xf32, #tpu.memory_space<vmem>>, vector<1x1x256xf32>
    %10 = vector.shape_cast %9 : vector<1x1x256xf32> to vector<1x256xf32>
    %11 = vector.broadcast %10 : vector<1x256xf32> to vector<8x256xf32>
    %12 = arith.addf %7, %11 : vector<8x256xf32>
    %cst_8 = arith.constant 0.000000e+00 : f32
    %13 = vector.broadcast %cst_8 : f32 to vector<8x256xf32>
    %14 = arith.maximumf %12, %13 : vector<8x256xf32>
    %15 = arith.truncf %14 : vector<8x256xf32> to vector<8x256xbf16>
    %16 = arith.index_cast %c0_i32 : i32 to index
    %c0_9 = arith.constant 0 : index
    %c0_10 = arith.constant 0 : index
    %17 = vector.load %arg5[%16, %c0_9, %c0_10] : memref<3x256x16xbf16, #tpu.memory_space<vmem>>, vector<1x256x16xbf16>
    %18 = vector.shape_cast %17 : vector<1x256x16xbf16> to vector<256x16xbf16>
    %cst_11 = arith.constant dense<0.000000e+00> : vector<8x16xf32>
    %19 = tpu.matmul %15, %18, %cst_11 {dimension_numbers = #tpu.dot_dimension_numbers<[1], [0], [0], [1], [0, 0, 1, 1], [], []>} : vector<8x256xbf16>, vector<256x16xbf16>, vector<8x16xf32> -> vector<8x16xf32>
    %20 = arith.index_cast %c0_i32 : i32 to index
    %c0_12 = arith.constant 0 : index
    %c0_13 = arith.constant 0 : index
    %21 = vector.load %arg6[%20, %c0_12, %c0_13] : memref<3x1x16xf32, #tpu.memory_space<vmem>>, vector<1x1x16xf32>
    %22 = vector.shape_cast %21 : vector<1x1x16xf32> to vector<1x16xf32>
    %23 = vector.broadcast %22 : vector<1x16xf32> to vector<8x16xf32>
    %24 = arith.addf %19, %23 : vector<8x16xf32>
    %25 = vector.extract_strided_slice %24 {offsets = [0, 0], sizes = [8, 8], strides = [1, 1]} : vector<8x16xf32> to vector<8x8xf32>
    %cst_14 = arith.constant -5.000000e+00 : f32
    %cst_15 = arith.constant 5.000000e+00 : f32
    %26 = vector.broadcast %cst_14 : f32 to vector<8x8xf32>
    %27 = arith.maximumf %26, %25 : vector<8x8xf32>
    %28 = vector.broadcast %cst_15 : f32 to vector<8x8xf32>
    %29 = arith.minimumf %28, %27 : vector<8x8xf32>
    %30 = vector.extract_strided_slice %24 {offsets = [0, 8], sizes = [8, 8], strides = [1, 1]} : vector<8x16xf32> to vector<8x8xf32>
    %31 = math.exp %29 : vector<8x8xf32>
    %32 = arith.mulf %2, %31 : vector<8x8xf32>
    %33 = arith.addf %32, %30 : vector<8x8xf32>
    %34 = arith.addf %3, %29 : vector<8x8xf32>
    %c1_i32 = arith.constant 1 : i32
    %35 = arith.index_cast %c1_i32 : i32 to index
    %c0_16 = arith.constant 0 : index
    %c0_17 = arith.constant 0 : index
    %36 = vector.load %arg3[%35, %c0_16, %c0_17] : memref<3x16x256xbf16, #tpu.memory_space<vmem>>, vector<1x16x256xbf16>
    %37 = vector.shape_cast %36 : vector<1x16x256xbf16> to vector<16x256xbf16>
    %cst_18 = arith.constant dense<0.000000e+00> : vector<8x256xf32>
    %38 = tpu.matmul %1, %37, %cst_18 {dimension_numbers = #tpu.dot_dimension_numbers<[1], [0], [0], [1], [0, 0, 1, 1], [], []>} : vector<8x16xbf16>, vector<16x256xbf16>, vector<8x256xf32> -> vector<8x256xf32>
    %39 = arith.index_cast %c1_i32 : i32 to index
    %c0_19 = arith.constant 0 : index
    %c0_20 = arith.constant 0 : index
    %40 = vector.load %arg4[%39, %c0_19, %c0_20] : memref<3x1x256xf32, #tpu.memory_space<vmem>>, vector<1x1x256xf32>
    %41 = vector.shape_cast %40 : vector<1x1x256xf32> to vector<1x256xf32>
    %42 = vector.broadcast %41 : vector<1x256xf32> to vector<8x256xf32>
    %43 = arith.addf %38, %42 : vector<8x256xf32>
    %cst_21 = arith.constant 0.000000e+00 : f32
    %44 = vector.broadcast %cst_21 : f32 to vector<8x256xf32>
    %45 = arith.maximumf %43, %44 : vector<8x256xf32>
    %46 = arith.truncf %45 : vector<8x256xf32> to vector<8x256xbf16>
    %47 = arith.index_cast %c1_i32 : i32 to index
    %c0_22 = arith.constant 0 : index
    %c0_23 = arith.constant 0 : index
    %48 = vector.load %arg5[%47, %c0_22, %c0_23] : memref<3x256x16xbf16, #tpu.memory_space<vmem>>, vector<1x256x16xbf16>
    %49 = vector.shape_cast %48 : vector<1x256x16xbf16> to vector<256x16xbf16>
    %cst_24 = arith.constant dense<0.000000e+00> : vector<8x16xf32>
    %50 = tpu.matmul %46, %49, %cst_24 {dimension_numbers = #tpu.dot_dimension_numbers<[1], [0], [0], [1], [0, 0, 1, 1], [], []>} : vector<8x256xbf16>, vector<256x16xbf16>, vector<8x16xf32> -> vector<8x16xf32>
    %51 = arith.index_cast %c1_i32 : i32 to index
    %c0_25 = arith.constant 0 : index
    %c0_26 = arith.constant 0 : index
    %52 = vector.load %arg6[%51, %c0_25, %c0_26] : memref<3x1x16xf32, #tpu.memory_space<vmem>>, vector<1x1x16xf32>
    %53 = vector.shape_cast %52 : vector<1x1x16xf32> to vector<1x16xf32>
    %54 = vector.broadcast %53 : vector<1x16xf32> to vector<8x16xf32>
    %55 = arith.addf %50, %54 : vector<8x16xf32>
    %56 = vector.extract_strided_slice %55 {offsets = [0, 0], sizes = [8, 8], strides = [1, 1]} : vector<8x16xf32> to vector<8x8xf32>
    %cst_27 = arith.constant -5.000000e+00 : f32
    %cst_28 = arith.constant 5.000000e+00 : f32
    %57 = vector.broadcast %cst_27 : f32 to vector<8x8xf32>
    %58 = arith.maximumf %57, %56 : vector<8x8xf32>
    %59 = vector.broadcast %cst_28 : f32 to vector<8x8xf32>
    %60 = arith.minimumf %59, %58 : vector<8x8xf32>
    %61 = vector.extract_strided_slice %55 {offsets = [0, 8], sizes = [8, 8], strides = [1, 1]} : vector<8x16xf32> to vector<8x8xf32>
    %62 = math.exp %60 : vector<8x8xf32>
    %63 = arith.mulf %33, %62 : vector<8x8xf32>
    %64 = arith.addf %63, %61 : vector<8x8xf32>
    %65 = arith.addf %34, %60 : vector<8x8xf32>
    %c2_i32 = arith.constant 2 : i32
    %66 = arith.index_cast %c2_i32 : i32 to index
    %c0_29 = arith.constant 0 : index
    %c0_30 = arith.constant 0 : index
    %67 = vector.load %arg3[%66, %c0_29, %c0_30] : memref<3x16x256xbf16, #tpu.memory_space<vmem>>, vector<1x16x256xbf16>
    %68 = vector.shape_cast %67 : vector<1x16x256xbf16> to vector<16x256xbf16>
    %cst_31 = arith.constant dense<0.000000e+00> : vector<8x256xf32>
    %69 = tpu.matmul %1, %68, %cst_31 {dimension_numbers = #tpu.dot_dimension_numbers<[1], [0], [0], [1], [0, 0, 1, 1], [], []>} : vector<8x16xbf16>, vector<16x256xbf16>, vector<8x256xf32> -> vector<8x256xf32>
    %70 = arith.index_cast %c2_i32 : i32 to index
    %c0_32 = arith.constant 0 : index
    %c0_33 = arith.constant 0 : index
    %71 = vector.load %arg4[%70, %c0_32, %c0_33] : memref<3x1x256xf32, #tpu.memory_space<vmem>>, vector<1x1x256xf32>
    %72 = vector.shape_cast %71 : vector<1x1x256xf32> to vector<1x256xf32>
    %73 = vector.broadcast %72 : vector<1x256xf32> to vector<8x256xf32>
    %74 = arith.addf %69, %73 : vector<8x256xf32>
    %cst_34 = arith.constant 0.000000e+00 : f32
    %75 = vector.broadcast %cst_34 : f32 to vector<8x256xf32>
    %76 = arith.maximumf %74, %75 : vector<8x256xf32>
    %77 = arith.truncf %76 : vector<8x256xf32> to vector<8x256xbf16>
    %78 = arith.index_cast %c2_i32 : i32 to index
    %c0_35 = arith.constant 0 : index
    %c0_36 = arith.constant 0 : index
    %79 = vector.load %arg5[%78, %c0_35, %c0_36] : memref<3x256x16xbf16, #tpu.memory_space<vmem>>, vector<1x256x16xbf16>
    %80 = vector.shape_cast %79 : vector<1x256x16xbf16> to vector<256x16xbf16>
    %cst_37 = arith.constant dense<0.000000e+00> : vector<8x16xf32>
    %81 = tpu.matmul %77, %80, %cst_37 {dimension_numbers = #tpu.dot_dimension_numbers<[1], [0], [0], [1], [0, 0, 1, 1], [], []>} : vector<8x256xbf16>, vector<256x16xbf16>, vector<8x16xf32> -> vector<8x16xf32>
    %82 = arith.index_cast %c2_i32 : i32 to index
    %c0_38 = arith.constant 0 : index
    %c0_39 = arith.constant 0 : index
    %83 = vector.load %arg6[%82, %c0_38, %c0_39] : memref<3x1x16xf32, #tpu.memory_space<vmem>>, vector<1x1x16xf32>
    %84 = vector.shape_cast %83 : vector<1x1x16xf32> to vector<1x16xf32>
    %85 = vector.broadcast %84 : vector<1x16xf32> to vector<8x16xf32>
    %86 = arith.addf %81, %85 : vector<8x16xf32>
    %87 = vector.extract_strided_slice %86 {offsets = [0, 0], sizes = [8, 8], strides = [1, 1]} : vector<8x16xf32> to vector<8x8xf32>
    %cst_40 = arith.constant -5.000000e+00 : f32
    %cst_41 = arith.constant 5.000000e+00 : f32
    %88 = vector.broadcast %cst_40 : f32 to vector<8x8xf32>
    %89 = arith.maximumf %88, %87 : vector<8x8xf32>
    %90 = vector.broadcast %cst_41 : f32 to vector<8x8xf32>
    %91 = arith.minimumf %90, %89 : vector<8x8xf32>
    %92 = vector.extract_strided_slice %86 {offsets = [0, 8], sizes = [8, 8], strides = [1, 1]} : vector<8x16xf32> to vector<8x8xf32>
    %93 = math.exp %91 : vector<8x8xf32>
    %94 = arith.mulf %64, %93 : vector<8x8xf32>
    %95 = arith.addf %94, %92 : vector<8x8xf32>
    %96 = arith.addf %65, %91 : vector<8x8xf32>
    %c3_i32 = arith.constant 3 : i32
    %c0_42 = arith.constant 0 : index
    %c0_43 = arith.constant 0 : index
    %97 = vector.load %arg7[%c0_42, %c0_43] : memref<8x8xf32, #tpu.memory_space<vmem>>, vector<8x8xf32>
    tpu.vector_store %arg7[%c0_42, %c0_43], %95 {strides = array<i32>} : memref<8x8xf32, #tpu.memory_space<vmem>>, vector<8x8xf32>,
    %98 = tpu.transpose %96, [1, 0] : vector<8x8xf32> -> vector<8x8xf32>
    %cst_44 = arith.constant dense<0.000000e+00> : vector<8xf32>
    %99 = vector.multi_reduction <add>, %98, %cst_44 [0] : vector<8x8xf32> to vector<8xf32>
    %100 = vector.shape_cast %99 : vector<8xf32> to vector<1x8xf32>
    %101 = vector.shape_cast %100 : vector<1x8xf32> to vector<1x8xf32>
    %102 = vector.broadcast %101 : vector<1x8xf32> to vector<8x8xf32>
    %c0_45 = arith.constant 0 : index
    %c0_46 = arith.constant 0 : index
    %103 = vector.load %arg8[%c0_45, %c0_46] : memref<8x8xf32, #tpu.memory_space<vmem>>, vector<8x8xf32>
    tpu.vector_store %arg8[%c0_45, %c0_46], %102 {strides = array<i32>} : memref<8x8xf32, #tpu.memory_space<vmem>>, vector<8x8xf32>,
    return
  }
  func.func @transform_0(%arg0: i32) -> (i32, i32) {
    %c0_i32 = arith.constant 0 : i32
    %c0_i32_0 = arith.constant 0 : i32
    return %arg0, %c0_i32 : i32, i32
  }
  func.func @transform_1(%arg0: i32) -> (i32, i32) {
    %c0_i32 = arith.constant 0 : i32
    %c0_i32_0 = arith.constant 0 : i32
    return %arg0, %c0_i32 : i32, i32
  }
  func.func @transform_2(%arg0: i32) -> (i32, i32, i32) {
    %c0_i32 = arith.constant 0 : i32
    %c0_i32_0 = arith.constant 0 : i32
    %c0_i32_1 = arith.constant 0 : i32
    %c0_i32_2 = arith.constant 0 : i32
    return %c0_i32, %c0_i32_0, %c0_i32_1 : i32, i32, i32
  }
  func.func @transform_3(%arg0: i32) -> (i32, i32, i32) {
    %c0_i32 = arith.constant 0 : i32
    %c0_i32_0 = arith.constant 0 : i32
    %c0_i32_1 = arith.constant 0 : i32
    %c0_i32_2 = arith.constant 0 : i32
    return %c0_i32, %c0_i32_0, %c0_i32_1 : i32, i32, i32
  }
  func.func @transform_4(%arg0: i32) -> (i32, i32, i32) {
    %c0_i32 = arith.constant 0 : i32
    %c0_i32_0 = arith.constant 0 : i32
    %c0_i32_1 = arith.constant 0 : i32
    %c0_i32_2 = arith.constant 0 : i32
    return %c0_i32, %c0_i32_0, %c0_i32_1 : i32, i32, i32
  }
  func.func @transform_5(%arg0: i32) -> (i32, i32, i32) {
    %c0_i32 = arith.constant 0 : i32
    %c0_i32_0 = arith.constant 0 : i32
    %c0_i32_1 = arith.constant 0 : i32
    %c0_i32_2 = arith.constant 0 : i32
    return %c0_i32, %c0_i32_0, %c0_i32_1 : i32, i32, i32
  }
  func.func @transform_6(%arg0: i32) -> (i32, i32) {
    %c0_i32 = arith.constant 0 : i32
    %c0_i32_0 = arith.constant 0 : i32
    return %arg0, %c0_i32 : i32, i32
  }
  func.func @transform_7(%arg0: i32) -> (i32, i32) {
    %c0_i32 = arith.constant 0 : i32
    %c0_i32_0 = arith.constant 0 : i32
    return %c0_i32, %arg0 : i32, i32
  }
}

</mosaic_0001>

<llo_original>
// kernel: tpu_custom_call.1
$region0: #{tpu_custom_call.1}
  #allocation0 [shape = 'u32[]', space=smem, size = 0x4, offset = 0x4, fixed_abs, tag = 'smem constant byte address 0x4 - core index']
  #allocation1 [shape = 'u32[72,128]{1,0:T(1,128)}', space=vmem, size = 0x9000, scoped, tag = 'internal scratch']
  %s0 = inlined_call_operand.vmem [shape: f32[8,16], index: 0, kind: input, shape index: {}]
  %s1 = inlined_call_operand.vmem [shape: f32[8,8], index: 1, kind: input, shape index: {}]
  %s2 = inlined_call_operand.vmem [shape: bf16[3,16,256], index: 2, kind: input, shape index: {}]
  %s3 = inlined_call_operand.vmem [shape: f32[3,1,256], index: 3, kind: input, shape index: {}]
  %s4 = inlined_call_operand.vmem [shape: bf16[3,256,16], index: 4, kind: input, shape index: {}]
  %s5 = inlined_call_operand.vmem [shape: f32[3,1,16], index: 5, kind: input, shape index: {}]
  %s6 = inlined_call_operand.hbm [shape: f32[8,8], index: 6, kind: output, shape index: {0}]
  %s7 = inlined_call_operand.hbm [shape: f32[8,8], index: 7, kind: output, shape index: {1}]
  %8 = xla_tuple %s6, %s7
  %s9 = sld [smem:[#allocation0]]
  $region42: #{tpu_custom_call.1} parent=0
    _
  %s11 = ssub.s32 1, %s9
  %s12 = scalar_select 0, %s11, %s9
  $region1: #{tpu_custom_call.1} parent=0
    #allocation2 [shape = 'u8[4096]{0}', space=vmem, size = 0x1000, scoped, tag = 'output window, operand 0, single buffered']
    #allocation3 [shape = 's32[1]{0}', space=sflag, size = 0x4, scoped, tag = 'scoped memory for tpu_custom_call.1']
    #allocation4 [shape = 'u8[4096]{0}', space=vmem, size = 0x1000, scoped, tag = 'output window, operand 1, single buffered']
    #allocation5 [shape = 's32[1]{0}', space=sflag, size = 0x4, scoped, tag = 'scoped memory for tpu_custom_call.1']
    %13 = vsyncpa [#allocation3], 0
    %14 = vsyncpa [#allocation5], 0
    // Predicated region
    $region2: #{tpu_custom_call.1} parent=1 // pred_check
      _
    $region3: #{tpu_custom_call.1} parent=1 // pred_check_branch
      %16 = sbr.rel (0) target = $region5
    $region4: #{tpu_custom_call.1} parent=1 // pred_region
      _
    $region5: #{tpu_custom_call.1} parent=1 // pred_fallthru
      _
    // Predicated region
    $region6: #{tpu_custom_call.1} parent=1 // pred_check
      _
    $region7: #{tpu_custom_call.1} parent=1 // pred_check_branch
      %18 = sbr.rel (0) target = $region9
    $region8: #{tpu_custom_call.1} parent=1 // pred_region
      _
    $region9: #{tpu_custom_call.1} parent=1 // pred_fallthru
      _
    // Predicated region
    $region10: #{tpu_custom_call.1} parent=1 // pred_check
      _
    $region11: #{tpu_custom_call.1} parent=1 // pred_check_branch
      %20 = sbr.rel (0) target = $region13
    $region12: #{tpu_custom_call.1} parent=1 // pred_region
      _
    $region13: #{tpu_custom_call.1} parent=1 // pred_fallthru
      _
    // Predicated region
    $region14: #{tpu_custom_call.1} parent=1 // pred_check
      _
    $region15: #{tpu_custom_call.1} parent=1 // pred_check_branch
      %22 = sbr.rel (0) target = $region17
    $region16: #{tpu_custom_call.1} parent=1 // pred_region
      _
    $region17: #{tpu_custom_call.1} parent=1 // pred_fallthru
      _
    // Predicated region
    $region18: #{tpu_custom_call.1} parent=1 // pred_check
      _
    $region19: #{tpu_custom_call.1} parent=1 // pred_check_branch
      %24 = sbr.rel (0) target = $region21
    $region20: #{tpu_custom_call.1} parent=1 // pred_region
      _
    $region21: #{tpu_custom_call.1} parent=1 // pred_fallthru
      _
    // Predicated region
    $region22: #{tpu_custom_call.1} parent=1 // pred_check
      _
    $region23: #{tpu_custom_call.1} parent=1 // pred_check_branch
      %26 = sbr.rel (0) target = $region25
    $region24: #{tpu_custom_call.1} parent=1 // pred_region
      _
    $region25: #{tpu_custom_call.1} parent=1 // pred_fallthru
      _
    %v28 = vld [vmem:[%s0] sm:$0xff]
    %v29 = vpack.c.bf16 %v28, %v28
    %v30 = vld [vmem:[%s1] sm:$0xff]
    %v31 = vld [vmem:[%s2] sm:$0xff]
    %v32 = vld [vmem:[%s2 + $0x8] sm:$0xff]
    %v33 = vld [vmem:[%s3] sm:$0x3]
    %v35 = vperm.slane %v33, 0
    %v36 = vperm.slane %v33, 1
    %v41 = vunpack.c.l.b16 %v31
    %v42 = vunpack.c.h.b16 %v31
    %v43 = vunpack.c.l.b16 %v32
    %v44 = vunpack.c.h.b16 %v32
    %v45 = vpack.c.b16 %v43, %v41
    %v46 = vpack.c.b16 %v44, %v42
    %vm49 = vcmask 130048
    %v51 = vsel %vm49, %v29, 0
    %53 = vmatpush.bf16.msra.mxu0 0
    %54 = vmatpush.bf16.msra.mxu0 0
    %55 = vmatpush.bf16.msra.mxu0 0
    %56 = vmatpush.bf16.msra.mxu0 0
    %57 = vmatpush.bf16.msra.mxu0 0
    %58 = vmatpush.bf16.msra.mxu0 0
    %59 = vmatpush.bf16.msra.mxu0 0
    %60 = vmatpush.bf16.msra.mxu0 %v45
    %61 = vmatmul.bf16.gmra.mxu0 %v51
    %v62 = vpop.f32.mrf.mxu0
    %v63 = vadd.f32 %v35, %v62
    %v64 = vpop.f32.mrf.mxu0
    %65 = vdwg.mxu0
    %66 = vmatpush.bf16.msra.mxu0 0
    %67 = vmatpush.bf16.msra.mxu0 0
    %68 = vmatpush.bf16.msra.mxu0 0
    %69 = vmatpush.bf16.msra.mxu0 0
    %70 = vmatpush.bf16.msra.mxu0 0
    %71 = vmatpush.bf16.msra.mxu0 0
    %72 = vmatpush.bf16.msra.mxu0 0
    %73 = vmatpush.bf16.msra.mxu0 %v46
    %74 = vmatmul.bf16.gmra.mxu0 %v51
    %v75 = vpop.f32.mrf.mxu0
    %v76 = vadd.f32 %v36, %v75
    %v77 = vpop.f32.mrf.mxu0
    %78 = vdwg.mxu0
    %v79 = vmax.f32 %v63, 0.0
    %v80 = vmax.f32 %v76, 0.0
    %v81 = vpack.c.bf16 %v79, %v79
    %v82 = vpack.c.bf16 %v80, %v80
    %v83 = vld [vmem:[%s4] sm:$0xf]
    %v84 = vld [vmem:[%s4 + $0x4] sm:$0xf]
    %v85 = vld [vmem:[%s4 + $0x8] sm:$0xf]
    %v86 = vld [vmem:[%s4 + $0xc] sm:$0xf]
    %v87 = vld [vmem:[%s4 + $0x10] sm:$0xf]
    %v88 = vld [vmem:[%s4 + $0x14] sm:$0xf]
    %v89 = vld [vmem:[%s4 + $0x18] sm:$0xf]
    %v90 = vld [vmem:[%s4 + $0x1c] sm:$0xf]
    %v91 = vld [vmem:[%s4 + $0x20] sm:$0xf]
    %v92 = vld [vmem:[%s4 + $0x24] sm:$0xf]
    %v93 = vld [vmem:[%s4 + $0x28] sm:$0xf]
    %v94 = vld [vmem:[%s4 + $0x2c] sm:$0xf]
    %v95 = vld [vmem:[%s4 + $0x30] sm:$0xf]
    %v96 = vld [vmem:[%s4 + $0x34] sm:$0xf]
    %v97 = vld [vmem:[%s4 + $0x38] sm:$0xf]
    %v98 = vld [vmem:[%s4 + $0x3c] sm:$0xf]
    %v99 = vld [vmem:[%s4 + $0x40] sm:$0xf]
    %v100 = vld [vmem:[%s4 + $0x44] sm:$0xf]
    %v101 = vld [vmem:[%s4 + $0x48] sm:$0xf]
    %v102 = vld [vmem:[%s4 + $0x4c] sm:$0xf]
    %v103 = vld [vmem:[%s4 + $0x50] sm:$0xf]
    %v104 = vld [vmem:[%s4 + $0x54] sm:$0xf]
    %v105 = vld [vmem:[%s4 + $0x58] sm:$0xf]
    %v106 = vld [vmem:[%s4 + $0x5c] sm:$0xf]
    %v107 = vld [vmem:[%s4 + $0x60] sm:$0xf]
    %v108 = vld [vmem:[%s4 + $0x64] sm:$0xf]
    %v109 = vld [vmem:[%s4 + $0x68] sm:$0xf]
    %v110 = vld [vmem:[%s4 + $0x6c] sm:$0xf]
    %v111 = vld [vmem:[%s4 + $0x70] sm:$0xf]
    %v112 = vld [vmem:[%s4 + $0x74] sm:$0xf]
    %v113 = vld [vmem:[%s4 + $0x78] sm:$0xf]
    %v114 = vld [vmem:[%s4 + $0x7c] sm:$0xf]
    %v115 = vld [vmem:[%s5] sm:$0x1]
    %v117 = vperm.slane %v115, 0
    %v151 = vunpack.c.l.b16 %v83
    %v152 = vunpack.c.l.b16 %v84
    %v153 = vunpack.c.l.b16 %v85
    %v154 = vunpack.c.l.b16 %v86
    %v155 = vunpack.c.l.b16 %v87
    %v156 = vunpack.c.l.b16 %v88
    %v157 = vunpack.c.l.b16 %v89
    %v158 = vunpack.c.l.b16 %v90
    %v159 = vunpack.c.l.b16 %v91
    %v160 = vunpack.c.l.b16 %v92
    %v161 = vunpack.c.l.b16 %v93
    %v162 = vunpack.c.l.b16 %v94
    %v163 = vunpack.c.l.b16 %v95
    %v164 = vunpack.c.l.b16 %v96
    %v165 = vunpack.c.l.b16 %v97
    %v166 = vunpack.c.l.b16 %v98
    %v167 = vunpack.c.l.b16 %v99
    %v168 = vunpack.c.l.b16 %v100
    %v169 = vunpack.c.l.b16 %v101
    %v170 = vunpack.c.l.b16 %v102
    %v171 = vunpack.c.l.b16 %v103
    %v172 = vunpack.c.l.b16 %v104
    %v173 = vunpack.c.l.b16 %v105
    %v174 = vunpack.c.l.b16 %v106
    %v175 = vunpack.c.l.b16 %v107
    %v176 = vunpack.c.l.b16 %v108
    %v177 = vunpack.c.l.b16 %v109
    %v178 = vunpack.c.l.b16 %v110
    %v179 = vunpack.c.l.b16 %v111
    %v180 = vunpack.c.l.b16 %v112
    %v181 = vunpack.c.l.b16 %v113
    %v182 = vunpack.c.l.b16 %v114
    %v183 = vpack.c.b16 %v152, %v151
    %v184 = vpack.c.b16 %v154, %v153
    %v185 = vpack.c.b16 %v156, %v155
    %v186 = vpack.c.b16 %v158, %v157
    %v187 = vpack.c.b16 %v160, %v159
    %v188 = vpack.c.b16 %v162, %v161
    %v189 = vpack.c.b16 %v164, %v163
    %v190 = vpack.c.b16 %v166, %v165
    %v191 = vpack.c.b16 %v168, %v167
    %v192 = vpack.c.b16 %v170, %v169
    %v193 = vpack.c.b16 %v172, %v171
    %v194 = vpack.c.b16 %v174, %v173
    %v195 = vpack.c.b16 %v176, %v175
    %v196 = vpack.c.b16 %v178, %v177
    %v197 = vpack.c.b16 %v180, %v179
    %v198 = vpack.c.b16 %v182, %v181
    %215 = vmatpush.bf16.msra.mxu0 %v190
    %216 = vmatpush.bf16.msra.mxu0 %v189
    %217 = vmatpush.bf16.msra.mxu0 %v188
    %218 = vmatpush.bf16.msra.mxu0 %v187
    %219 = vmatpush.bf16.msra.mxu0 %v186
    %220 = vmatpush.bf16.msra.mxu0 %v185
    %221 = vmatpush.bf16.msra.mxu0 %v184
    %222 = vmatpush.bf16.msra.mxu0 %v183
    %223 = vmatmul.bf16.gmra.mxu0 %v81
    %v224 = vpop.f32.mrf.mxu0
    %v225 = vadd.f32 %v117, %v224
    %v226 = vpop.f32.mrf.mxu0
    %227 = vdwg.mxu0
    %228 = vmatpush.bf16.msra.mxu0 %v198
    %229 = vmatpush.bf16.msra.mxu0 %v197
    %230 = vmatpush.bf16.msra.mxu0 %v196
    %231 = vmatpush.bf16.msra.mxu0 %v195
    %232 = vmatpush.bf16.msra.mxu0 %v194
    %233 = vmatpush.bf16.msra.mxu0 %v193
    %234 = vmatpush.bf16.msra.mxu0 %v192
    %235 = vmatpush.bf16.msra.mxu0 %v191
    %236 = vmatmul.bf16.gmra.mxu0 %v82
    %v237 = vpop.f32.mrf.mxu0
    %v238 = vadd.f32 %v225, %v237
    %v239 = vpop.f32.mrf.mxu0
    %240 = vdwg.mxu0
    %v241 = vmax.f32 %v238, -5.0
    %v242 = vmin.f32 %v241, 5.0
    %v243 = vmul.f32 %v242, 1.442695
    %v244 = vpow.pop %v243
    %v245 = vmul.f32 %v30, %v244
    %247 = vrot.lane.b32.xlu0 %v238, 120
    %v248 = vpop.permute.xlu0 %247
    %v250 = vadd.f32 %v245, %v248
    %v251 = vadd.f32 %v242, 0.0
    %s252 = scalar_lea.vmem %s2, 16
    %v253 = vld [vmem:[%s252] sm:$0xff]
    %v254 = vld [vmem:[%s252 + $0x8] sm:$0xff]
    %s255 = scalar_lea.vmem %s3, 2
    %v256 = vld [vmem:[%s255] sm:$0x3]
    %v258 = vperm.slane %v256, 0
    %v259 = vperm.slane %v256, 1
    %v264 = vunpack.c.l.b16 %v253
    %v265 = vunpack.c.h.b16 %v253
    %v266 = vunpack.c.l.b16 %v254
    %v267 = vunpack.c.h.b16 %v254
    %v268 = vpack.c.b16 %v266, %v264
    %v269 = vpack.c.b16 %v267, %v265
    %272 = vmatpush.bf16.msra.mxu0 0
    %273 = vmatpush.bf16.msra.mxu0 0
    %274 = vmatpush.bf16.msra.mxu0 0
    %275 = vmatpush.bf16.msra.mxu0 0
    %276 = vmatpush.bf16.msra.mxu0 0
    %277 = vmatpush.bf16.msra.mxu0 0
    %278 = vmatpush.bf16.msra.mxu0 0
    %279 = vmatpush.bf16.msra.mxu0 %v268
    %280 = vmatmul.bf16.gmra.mxu0 %v51
    %v281 = vpop.f32.mrf.mxu0
    %v282 = vadd.f32 %v258, %v281
    %v283 = vpop.f32.mrf.mxu0
    %284 = vdwg.mxu0
    %285 = vmatpush.bf16.msra.mxu0 0
    %286 = vmatpush.bf16.msra.mxu0 0
    %287 = vmatpush.bf16.msra.mxu0 0
    %288 = vmatpush.bf16.msra.mxu0 0
    %289 = vmatpush.bf16.msra.mxu0 0
    %290 = vmatpush.bf16.msra.mxu0 0
    %291 = vmatpush.bf16.msra.mxu0 0
    %292 = vmatpush.bf16.msra.mxu0 %v269
    %293 = vmatmul.bf16.gmra.mxu0 %v51
    %v294 = vpop.f32.mrf.mxu0
    %v295 = vadd.f32 %v259, %v294
    %v296 = vpop.f32.mrf.mxu0
    %297 = vdwg.mxu0
    %v298 = vmax.f32 %v282, 0.0
    %v299 = vmax.f32 %v295, 0.0
    %v300 = vpack.c.bf16 %v298, %v298
    %v301 = vpack.c.bf16 %v299, %v299
    %s302 = scalar_lea.vmem %s4, 128
    %v303 = vld [vmem:[%s302] sm:$0xf]
    %v304 = vld [vmem:[%s302 + $0x4] sm:$0xf]
    %v305 = vld [vmem:[%s302 + $0x8] sm:$0xf]
    %v306 = vld [vmem:[%s302 + $0xc] sm:$0xf]
    %v307 = vld [vmem:[%s302 + $0x10] sm:$0xf]
    %v308 = vld [vmem:[%s302 + $0x14] sm:$0xf]
    %v309 = vld [vmem:[%s302 + $0x18] sm:$0xf]
    %v310 = vld [vmem:[%s302 + $0x1c] sm:$0xf]
    %v311 = vld [vmem:[%s302 + $0x20] sm:$0xf]
    %v312 = vld [vmem:[%s302 + $0x24] sm:$0xf]
    %v313 = vld [vmem:[%s302 + $0x28] sm:$0xf]
    %v314 = vld [vmem:[%s302 + $0x2c] sm:$0xf]
    %v315 = vld [vmem:[%s302 + $0x30] sm:$0xf]
    %v316 = vld [vmem:[%s302 + $0x34] sm:$0xf]
    %v317 = vld [vmem:[%s302 + $0x38] sm:$0xf]
    %v318 = vld [vmem:[%s302 + $0x3c] sm:$0xf]
    %v319 = vld [vmem:[%s302 + $0x40] sm:$0xf]
    %v320 = vld [vmem:[%s302 + $0x44] sm:$0xf]
    %v321 = vld [vmem:[%s302 + $0x48] sm:$0xf]
    %v322 = vld [vmem:[%s302 + $0x4c] sm:$0xf]
    %v323 = vld [vmem:[%s302 + $0x50] sm:$0xf]
    %v324 = vld [vmem:[%s302 + $0x54] sm:$0xf]
    %v325 = vld [vmem:[%s302 + $0x58] sm:$0xf]
    %v326 = vld [vmem:[%s302 + $0x5c] sm:$0xf]
    %v327 = vld [vmem:[%s302 + $0x60] sm:$0xf]
    %v328 = vld [vmem:[%s302 + $0x64] sm:$0xf]
    %v329 = vld [vmem:[%s302 + $0x68] sm:$0xf]
    %v330 = vld [vmem:[%s302 + $0x6c] sm:$0xf]
    %v331 = vld [vmem:[%s302 + $0x70] sm:$0xf]
    %v332 = vld [vmem:[%s302 + $0x74] sm:$0xf]
    %v333 = vld [vmem:[%s302 + $0x78] sm:$0xf]
    %v334 = vld [vmem:[%s302 + $0x7c] sm:$0xf]
    %s335 = scalar_lea.vmem %s5, 1
    %v336 = vld [vmem:[%s335] sm:$0x1]
    %v338 = vperm.slane %v336, 0
    %v372 = vunpack.c.l.b16 %v303
    %v373 = vunpack.c.l.b16 %v304
    %v374 = vunpack.c.l.b16 %v305
    %v375 = vunpack.c.l.b16 %v306
    %v376 = vunpack.c.l.b16 %v307
    %v377 = vunpack.c.l.b16 %v308
    %v378 = vunpack.c.l.b16 %v309
    %v379 = vunpack.c.l.b16 %v310
    %v380 = vunpack.c.l.b16 %v311
    %v381 = vunpack.c.l.b16 %v312
    %v382 = vunpack.c.l.b16 %v313
    %v383 = vunpack.c.l.b16 %v314
    %v384 = vunpack.c.l.b16 %v315
    %v385 = vunpack.c.l.b16 %v316
    %v386 = vunpack.c.l.b16 %v317
    %v387 = vunpack.c.l.b16 %v318
    %v388 = vunpack.c.l.b16 %v319
    %v389 = vunpack.c.l.b16 %v320
    %v390 = vunpack.c.l.b16 %v321
    %v391 = vunpack.c.l.b16 %v322
    %v392 = vunpack.c.l.b16 %v323
    %v393 = vunpack.c.l.b16 %v324
    %v394 = vunpack.c.l.b16 %v325
    %v395 = vunpack.c.l.b16 %v326
    %v396 = vunpack.c.l.b16 %v327
    %v397 = vunpack.c.l.b16 %v328
    %v398 = vunpack.c.l.b16 %v329
    %v399 = vunpack.c.l.b16 %v330
    %v400 = vunpack.c.l.b16 %v331
    %v401 = vunpack.c.l.b16 %v332
    %v402 = vunpack.c.l.b16 %v333
    %v403 = vunpack.c.l.b16 %v334
    %v404 = vpack.c.b16 %v373, %v372
    %v405 = vpack.c.b16 %v375, %v374
    %v406 = vpack.c.b16 %v377, %v376
    %v407 = vpack.c.b16 %v379, %v378
    %v408 = vpack.c.b16 %v381, %v380
    %v409 = vpack.c.b16 %v383, %v382
    %v410 = vpack.c.b16 %v385, %v384
    %v411 = vpack.c.b16 %v387, %v386
    %v412 = vpack.c.b16 %v389, %v388
    %v413 = vpack.c.b16 %v391, %v390
    %v414 = vpack.c.b16 %v393, %v392
    %v415 = vpack.c.b16 %v395, %v394
    %v416 = vpack.c.b16 %v397, %v396
    %v417 = vpack.c.b16 %v399, %v398
    %v418 = vpack.c.b16 %v401, %v400
    %v419 = vpack.c.b16 %v403, %v402
    %436 = vmatpush.bf16.msra.mxu0 %v411
    %437 = vmatpush.bf16.msra.mxu0 %v410
    %438 = vmatpush.bf16.msra.mxu0 %v409
    %439 = vmatpush.bf16.msra.mxu0 %v408
    %440 = vmatpush.bf16.msra.mxu0 %v407
    %441 = vmatpush.bf16.msra.mxu0 %v406
    %442 = vmatpush.bf16.msra.mxu0 %v405
    %443 = vmatpush.bf16.msra.mxu0 %v404
    %444 = vmatmul.bf16.gmra.mxu0 %v300
    %v445 = vpop.f32.mrf.mxu0
    %v446 = vadd.f32 %v338, %v445
    %v447 = vpop.f32.mrf.mxu0
    %448 = vdwg.mxu0
    %449 = vmatpush.bf16.msra.mxu0 %v419
    %450 = vmatpush.bf16.msra.mxu0 %v418
    %451 = vmatpush.bf16.msra.mxu0 %v417
    %452 = vmatpush.bf16.msra.mxu0 %v416
    %453 = vmatpush.bf16.msra.mxu0 %v415
    %454 = vmatpush.bf16.msra.mxu0 %v414
    %455 = vmatpush.bf16.msra.mxu0 %v413
    %456 = vmatpush.bf16.msra.mxu0 %v412
    %457 = vmatmul.bf16.gmra.mxu0 %v301
    %v458 = vpop.f32.mrf.mxu0
    %v459 = vadd.f32 %v446, %v458
    %v460 = vpop.f32.mrf.mxu0
    %461 = vdwg.mxu0
    %v462 = vmax.f32 %v459, -5.0
    %v463 = vmin.f32 %v462, 5.0
    %v464 = vmul.f32 %v463, 1.442695
    %v465 = vpow.pop %v464
    %v466 = vmul.f32 %v250, %v465
    %468 = vrot.lane.b32.xlu0 %v459, 120
    %v469 = vpop.permute.xlu0 %468
    %v471 = vadd.f32 %v466, %v469
    %v472 = vadd.f32 %v251, %v463
    %s473 = scalar_lea.vmem %s2, 32
    %v474 = vld [vmem:[%s473] sm:$0xff]
    %v475 = vld [vmem:[%s473 + $0x8] sm:$0xff]
    %s476 = scalar_lea.vmem %s3, 4
    %v477 = vld [vmem:[%s476] sm:$0x3]
    %v479 = vperm.slane %v477, 0
    %v480 = vperm.slane %v477, 1
    %v485 = vunpack.c.l.b16 %v474
    %v486 = vunpack.c.h.b16 %v474
    %v487 = vunpack.c.l.b16 %v475
    %v488 = vunpack.c.h.b16 %v475
    %v489 = vpack.c.b16 %v487, %v485
    %v490 = vpack.c.b16 %v488, %v486
    %493 = vmatpush.bf16.msra.mxu0 0
    %494 = vmatpush.bf16.msra.mxu0 0
    %495 = vmatpush.bf16.msra.mxu0 0
    %496 = vmatpush.bf16.msra.mxu0 0
    %497 = vmatpush.bf16.msra.mxu0 0
    %498 = vmatpush.bf16.msra.mxu0 0
    %499 = vmatpush.bf16.msra.mxu0 0
    %500 = vmatpush.bf16.msra.mxu0 %v489
    %501 = vmatmul.bf16.gmra.mxu0 %v51
    %v502 = vpop.f32.mrf.mxu0
    %v503 = vadd.f32 %v479, %v502
    %v504 = vpop.f32.mrf.mxu0
    %505 = vdwg.mxu0
    %506 = vmatpush.bf16.msra.mxu0 0
    %507 = vmatpush.bf16.msra.mxu0 0
    %508 = vmatpush.bf16.msra.mxu0 0
    %509 = vmatpush.bf16.msra.mxu0 0
    %510 = vmatpush.bf16.msra.mxu0 0
    %511 = vmatpush.bf16.msra.mxu0 0
    %512 = vmatpush.bf16.msra.mxu0 0
    %513 = vmatpush.bf16.msra.mxu0 %v490
    %514 = vmatmul.bf16.gmra.mxu0 %v51
    %v515 = vpop.f32.mrf.mxu0
    %v516 = vadd.f32 %v480, %v515
    %v517 = vpop.f32.mrf.mxu0
    %518 = vdwg.mxu0
    %v519 = vmax.f32 %v503, 0.0
    %v520 = vmax.f32 %v516, 0.0
    %v521 = vpack.c.bf16 %v519, %v519
    %v522 = vpack.c.bf16 %v520, %v520
    %s523 = scalar_lea.vmem %s4, 256
    %v524 = vld [vmem:[%s523] sm:$0xf]
    %v525 = vld [vmem:[%s523 + $0x4] sm:$0xf]
    %v526 = vld [vmem:[%s523 + $0x8] sm:$0xf]
    %v527 = vld [vmem:[%s523 + $0xc] sm:$0xf]
    %v528 = vld [vmem:[%s523 + $0x10] sm:$0xf]
    %v529 = vld [vmem:[%s523 + $0x14] sm:$0xf]
    %v530 = vld [vmem:[%s523 + $0x18] sm:$0xf]
    %v531 = vld [vmem:[%s523 + $0x1c] sm:$0xf]
    %v532 = vld [vmem:[%s523 + $0x20] sm:$0xf]
    %v533 = vld [vmem:[%s523 + $0x24] sm:$0xf]
    %v534 = vld [vmem:[%s523 + $0x28] sm:$0xf]
    %v535 = vld [vmem:[%s523 + $0x2c] sm:$0xf]
    %v536 = vld [vmem:[%s523 + $0x30] sm:$0xf]
    %v537 = vld [vmem:[%s523 + $0x34] sm:$0xf]
    %v538 = vld [vmem:[%s523 + $0x38] sm:$0xf]
    %v539 = vld [vmem:[%s523 + $0x3c] sm:$0xf]
    %v540 = vld [vmem:[%s523 + $0x40] sm:$0xf]
    %v541 = vld [vmem:[%s523 + $0x44] sm:$0xf]
    %v542 = vld [vmem:[%s523 + $0x48] sm:$0xf]
    %v543 = vld [vmem:[%s523 + $0x4c] sm:$0xf]
    %v544 = vld [vmem:[%s523 + $0x50] sm:$0xf]
    %v545 = vld [vmem:[%s523 + $0x54] sm:$0xf]
    %v546 = vld [vmem:[%s523 + $0x58] sm:$0xf]
    %v547 = vld [vmem:[%s523 + $0x5c] sm:$0xf]
    %v548 = vld [vmem:[%s523 + $0x60] sm:$0xf]
    %v549 = vld [vmem:[%s523 + $0x64] sm:$0xf]
    %v550 = vld [vmem:[%s523 + $0x68] sm:$0xf]
    %v551 = vld [vmem:[%s523 + $0x6c] sm:$0xf]
    %v552 = vld [vmem:[%s523 + $0x70] sm:$0xf]
    %v553 = vld [vmem:[%s523 + $0x74] sm:$0xf]
    %v554 = vld [vmem:[%s523 + $0x78] sm:$0xf]
    %v555 = vld [vmem:[%s523 + $0x7c] sm:$0xf]
    %s556 = scalar_lea.vmem %s5, 2
    %v557 = vld [vmem:[%s556] sm:$0x1]
    %v559 = vperm.slane %v557, 0
    %v593 = vunpack.c.l.b16 %v524
    %v594 = vunpack.c.l.b16 %v525
    %v595 = vunpack.c.l.b16 %v526
    %v596 = vunpack.c.l.b16 %v527
    %v597 = vunpack.c.l.b16 %v528
    %v598 = vunpack.c.l.b16 %v529
    %v599 = vunpack.c.l.b16 %v530
    %v600 = vunpack.c.l.b16 %v531
    %v601 = vunpack.c.l.b16 %v532
    %v602 = vunpack.c.l.b16 %v533
    %v603 = vunpack.c.l.b16 %v534
    %v604 = vunpack.c.l.b16 %v535
    %v605 = vunpack.c.l.b16 %v536
    %v606 = vunpack.c.l.b16 %v537
    %v607 = vunpack.c.l.b16 %v538
    %v608 = vunpack.c.l.b16 %v539
    %v609 = vunpack.c.l.b16 %v540
    %v610 = vunpack.c.l.b16 %v541
    %v611 = vunpack.c.l.b16 %v542
    %v612 = vunpack.c.l.b16 %v543
    %v613 = vunpack.c.l.b16 %v544
    %v614 = vunpack.c.l.b16 %v545
    %v615 = vunpack.c.l.b16 %v546
    %v616 = vunpack.c.l.b16 %v547
    %v617 = vunpack.c.l.b16 %v548
    %v618 = vunpack.c.l.b16 %v549
    %v619 = vunpack.c.l.b16 %v550
    %v620 = vunpack.c.l.b16 %v551
    %v621 = vunpack.c.l.b16 %v552
    %v622 = vunpack.c.l.b16 %v553
    %v623 = vunpack.c.l.b16 %v554
    %v624 = vunpack.c.l.b16 %v555
    %v625 = vpack.c.b16 %v594, %v593
    %v626 = vpack.c.b16 %v596, %v595
    %v627 = vpack.c.b16 %v598, %v597
    %v628 = vpack.c.b16 %v600, %v599
    %v629 = vpack.c.b16 %v602, %v601
    %v630 = vpack.c.b16 %v604, %v603
    %v631 = vpack.c.b16 %v606, %v605
    %v632 = vpack.c.b16 %v608, %v607
    %v633 = vpack.c.b16 %v610, %v609
    %v634 = vpack.c.b16 %v612, %v611
    %v635 = vpack.c.b16 %v614, %v613
    %v636 = vpack.c.b16 %v616, %v615
    %v637 = vpack.c.b16 %v618, %v617
    %v638 = vpack.c.b16 %v620, %v619
    %v639 = vpack.c.b16 %v622, %v621
    %v640 = vpack.c.b16 %v624, %v623
    %657 = vmatpush.bf16.msra.mxu0 %v632
    %658 = vmatpush.bf16.msra.mxu0 %v631
    %659 = vmatpush.bf16.msra.mxu0 %v630
    %660 = vmatpush.bf16.msra.mxu0 %v629
    %661 = vmatpush.bf16.msra.mxu0 %v628
    %662 = vmatpush.bf16.msra.mxu0 %v627
    %663 = vmatpush.bf16.msra.mxu0 %v626
    %664 = vmatpush.bf16.msra.mxu0 %v625
    %665 = vmatmul.bf16.gmra.mxu0 %v521
    %v666 = vpop.f32.mrf.mxu0
    %v667 = vadd.f32 %v559, %v666
    %v668 = vpop.f32.mrf.mxu0
    %669 = vdwg.mxu0
    %670 = vmatpush.bf16.msra.mxu0 %v640
    %671 = vmatpush.bf16.msra.mxu0 %v639
    %672 = vmatpush.bf16.msra.mxu0 %v638
    %673 = vmatpush.bf16.msra.mxu0 %v637
    %674 = vmatpush.bf16.msra.mxu0 %v636
    %675 = vmatpush.bf16.msra.mxu0 %v635
    %676 = vmatpush.bf16.msra.mxu0 %v634
    %677 = vmatpush.bf16.msra.mxu0 %v633
    %678 = vmatmul.bf16.gmra.mxu0 %v522
    %v679 = vpop.f32.mrf.mxu0
    %v680 = vadd.f32 %v667, %v679
    %v681 = vpop.f32.mrf.mxu0
    %682 = vdwg.mxu0
    %v683 = vmax.f32 %v680, -5.0
    %v684 = vmin.f32 %v683, 5.0
    %v685 = vmul.f32 %v684, 1.442695
    %v686 = vpow.pop %v685
    %v687 = vmul.f32 %v471, %v686
    %689 = vrot.lane.b32.xlu0 %v680, 120
    %v690 = vpop.permute.xlu0 %689
    %v692 = vadd.f32 %v687, %v690
    %v693 = vadd.f32 %v472, %v684
    %vm694 = vcmask 64512
    %695 = vst.msk [vmem:[#allocation2] sm:$0xff] %vm694, %v692
    %696 = vxpose.xlu0.b32.start [1/16] %v693, 128
    %697 = vxpose.xlu0.b32.cont [2/16] 0.0, 128
    %698 = vxpose.xlu0.b32.cont [3/16] 0.0, 128
    %699 = vxpose.xlu0.b32.cont [4/16] 0.0, 128
    %700 = vxpose.xlu0.b32.cont [5/16] 0.0, 128
    %701 = vxpose.xlu0.b32.cont [6/16] 0.0, 128
    %702 = vxpose.xlu0.b32.cont [7/16] 0.0, 128
    %703 = vxpose.xlu0.b32.cont [8/16] 0.0, 128
    %704 = vxpose.xlu0.b32.cont [9/16] 0.0, 128
    %705 = vxpose.xlu0.b32.cont [10/16] 0.0, 128
    %706 = vxpose.xlu0.b32.cont [11/16] 0.0, 128
    %707 = vxpose.xlu0.b32.cont [12/16] 0.0, 128
    %708 = vxpose.xlu0.b32.cont [13/16] 0.0, 128
    %709 = vxpose.xlu0.b32.cont [14/16] 0.0, 128
    %710 = vxpose.xlu0.b32.cont [15/16] 0.0, 128
    %711 = vxpose.xlu0.b32.end [16/16] 0.0, 128
    %v712 = vpop.trf.xlu0
    %v713 = vpop.trf.xlu0
    %v714 = vpop.trf.xlu0
    %v715 = vpop.trf.xlu0
    %v716 = vpop.trf.xlu0
    %v717 = vpop.trf.xlu0
    %v718 = vpop.trf.xlu0
    %v719 = vpop.trf.xlu0
    %v720 = vpop.trf.xlu0
    %v721 = vpop.trf.xlu0
    %v722 = vpop.trf.xlu0
    %v723 = vpop.trf.xlu0
    %v724 = vpop.trf.xlu0
    %v725 = vpop.trf.xlu0
    %v726 = vpop.trf.xlu0
    %v727 = vpop.trf.xlu0
    %v728 = vsel %vm694, %v712, 0.0
    %v729 = vrot.slane %v728, 4
    %v730 = vadd.f32 %v728, %v729
    %v731 = vrot.slane %v730, 2
    %v732 = vadd.f32 %v730, %v731
    %v733 = vrot.slane %v732, 1
    %v734 = vadd.f32 %v732, %v733
    %735 = vst.msk [vmem:[#allocation4] sm:$0xff] %vm694, %v734
    // Predicated region
    $region26: #{tpu_custom_call.1} parent=1 // pred_check
      _
    $region27: #{tpu_custom_call.1} parent=1 // pred_check_branch
      %737 = sbr.rel (0) target = $region29
    $region28: #{tpu_custom_call.1} parent=1 // pred_region
      %739 = vsyncadd [#allocation3], 0
      %s741 = sshll.u32 [#allocation2], 4
      %s742 = int_to_ptr.vmem [resolvable:$true] %s741
      %s743 = sshll.u32 %s6, 4
      %s744 = int_to_ptr.hbm [resolvable:$true] %s743
      %746 = dma.vmem_to_hbm [thread:$0]  %s742, 128, %s744, [#allocation3]
    $region29: #{tpu_custom_call.1} parent=1 // pred_fallthru
      _
    // Predicated region
    $region30: #{tpu_custom_call.1} parent=1 // pred_check
      _
    $region31: #{tpu_custom_call.1} parent=1 // pred_check_branch
      %748 = sbr.rel (0) target = $region33
    $region32: #{tpu_custom_call.1} parent=1 // pred_region
      %750 = vsyncadd [#allocation5], 0
      %s752 = sshll.u32 [#allocation4], 4
      %s753 = int_to_ptr.vmem [resolvable:$true] %s752
      %s754 = sshll.u32 %s7, 4
      %s755 = int_to_ptr.hbm [resolvable:$true] %s754
      %757 = dma.vmem_to_hbm [thread:$0]  %s753, 128, %s755, [#allocation5]
    $region33: #{tpu_custom_call.1} parent=1 // pred_fallthru
      _
    // Predicated region
    $region34: #{tpu_custom_call.1} parent=1 // pred_check
      _
    $region35: #{tpu_custom_call.1} parent=1 // pred_check_branch
      %759 = sbr.rel (0) target = $region37
    $region36: #{tpu_custom_call.1} parent=1 // pred_region
      %761 = dma.done [#allocation3], 128
    $region37: #{tpu_custom_call.1} parent=1 // pred_fallthru
      _
    // Predicated region
    $region38: #{tpu_custom_call.1} parent=1 // pred_check
      _
    $region39: #{tpu_custom_call.1} parent=1 // pred_check_branch
      %763 = sbr.rel (0) target = $region41
    $region40: #{tpu_custom_call.1} parent=1 // pred_region
      %765 = dma.done [#allocation5], 128
    $region41: #{tpu_custom_call.1} parent=1 // pred_fallthru
      _
    %766 = vsyncpa [#allocation3], 1
    %767 = vsyncpa [#allocation5], 1

</llo_original>
